<compile_context>
chip_gen: v7x
topology: tpu7x:2x2x1
jax: 0.10.0
libtpu: 0.0.40
codegen_flags: <defaults>
</compile_context>

<pallas_src>
import functools
import math

import numpy as np
import jax
import jax.numpy as jnp
from jax.experimental import pallas as pl
from jax.experimental.pallas import tpu as pltpu

_LANE = 128
_SUBLANE = 8


def _round_up(v, m):
    return ((v + m - 1) // m) * m


def _mlp_kernel(x_ref, *refs, plan, compute_dtype):
    """One node tile of the fused MLP.

    refs = (w0, b0, w1, b1, ..., o_ref).  `plan` is a static tuple of
    (kind, true_in_dim) per layer: "vpu_in" | "mxu" | "vpu_out1".
    """
    o_ref = refs[-1]
    wb = refs[:-1]
    n_layers = len(plan)

    h = x_ref[...].astype(jnp.float32)               # (TM, d0) activations, f32
    for l, (kind, true_in) in enumerate(plan):
        w_ref, b_ref = wb[2 * l], wb[2 * l + 1]
        if kind == "vpu_in":
            # Narrow input: sum of column-broadcast multiply-adds on the VPU
            # instead of a K=128 zero-padded MXU matmul.
            w = w_ref[...]                           # (true_in, d_out_pad) f32
            acc = h[:, 0:1] * w[0:1, :]
            for k in range(1, true_in):
                acc = acc + h[:, k:k + 1] * w[k:k + 1, :]
            h = acc + b_ref[...]
        elif kind == "vpu_out1":
            # output_dim == 1: elementwise multiply + lane reduction (XLU);
            # narrow (TM, 1) result -> narrow store, no padded writeback.
            h = jnp.sum(h * w_ref[...], axis=-1, keepdims=True) + b_ref[...]
        else:                                        # "mxu"
            h = jnp.dot(h.astype(compute_dtype), w_ref[...],
                        preferred_element_type=jnp.float32)
            h = h + b_ref[...]                       # bias stays f32
        if l < n_layers - 1:
            h = jnp.maximum(h, 0.0)                  # ReLU (not on last layer)

    n_out = o_ref.shape[-1]
    if h.shape[-1] != n_out:                         # drop padded output lanes
        h = h[:, :n_out]
    o_ref[...] = h.astype(o_ref.dtype)


def fcn_forward(x, layers, *, tile_m=1024, compute_dtype=jnp.bfloat16):
    """Forward pass of FullyConnected.

    x:      [num_nodes, input_dim] float32  (== batch.x in the PyTorch module)
    layers: list of (W, b) with W [in_features, out_features] (transpose of
            nn.Linear's [out, in]) and b [out_features].
    """
    n_nodes, n_input = x.shape
    n_layers = len(layers)
    assert layers[0][0].shape[0] == n_input
    dims = [n_input] + [w.shape[1] for w, _ in layers]
    n_output = dims[-1]

    # ---- Per-layer execution plan ------------------------------------------
    plan = []
    for l in range(n_layers):
        if l == 0 and dims[0] <= _SUBLANE:
            plan.append(("vpu_in", dims[0]))
        elif l == n_layers - 1 and n_layers > 1 and n_output == 1:
            plan.append(("vpu_out1", dims[l]))
        else:
            plan.append(("mxu", dims[l]))
    plan = tuple(plan)

    # Kernel-visible input width: true width for the VPU first layer,
    # lane-padded only when the first layer really is an MXU matmul.
    x_cols = dims[0] if plan[0][0] == "vpu_in" else _round_up(dims[0], _LANE)

    # ---- Pack (pad / pre-cast) weights & biases ----------------------------
    flat_wb, wb_specs = [], []
    for l, (w, b) in enumerate(layers):
        kind = plan[l][0]
        di, do = dims[l], dims[l + 1]
        if kind == "vpu_in":
            dop = _round_up(do, _LANE)
            w_p = jnp.zeros((di, dop), jnp.float32).at[:, :do].set(
                w.astype(jnp.float32))
            b_p = jnp.zeros((1, dop), jnp.float32).at[:, :do].set(
                b.reshape(1, -1).astype(jnp.float32))
        elif kind == "vpu_out1":
            dip = _round_up(di, _LANE)
            w_p = jnp.zeros((1, dip), jnp.float32).at[:, :di].set(
                w.reshape(-1).astype(jnp.float32)[None, :])
            b_p = b.reshape(1, 1).astype(jnp.float32)
        else:  # "mxu" -- pre-cast operands to the MXU dtype on the host
            dip, dop = _round_up(di, _LANE), _round_up(do, _LANE)
            w_p = jnp.zeros((dip, dop), compute_dtype).at[:di, :do].set(
                w.astype(compute_dtype))
            b_p = jnp.zeros((1, dop), jnp.float32).at[:, :do].set(
                b.reshape(1, -1).astype(jnp.float32))
        flat_wb.extend([w_p, b_p])
        # Constant block index -> weight/bias resident in VMEM across steps.
        wb_specs.append(pl.BlockSpec(w_p.shape, lambda i: (0, 0)))
        wb_specs.append(pl.BlockSpec(b_p.shape, lambda i: (0, 0)))

    # ---- Node-tile size from per-generation VMEM budget + megacore split ---
    try:
        vmem_cap = int(pltpu.get_tpu_info().vmem_capacity_bytes)
    except Exception:
        vmem_cap = 64 << 20                          # v7x-safe fallback
    vmem_budget = (vmem_cap * 3) // 4                # leave headroom

    weight_bytes = sum(int(a.size) * a.dtype.itemsize for a in flat_wb)
    max_w = max([x_cols] + [_round_up(d, _LANE) for d in dims[1:]])
    # Bytes per node row: double-buffered IO tiles (f32) + f32 activation
    # temporaries between layers (+ a bf16 cast copy).
    per_row = 8 * (x_cols + n_output) + 12 * max_w + 2 * max_w
    avail = max(vmem_budget - 2 * weight_bytes - (4 << 20), 0)
    tm_vmem = max(_SUBLANE, (avail // max(per_row, 1)) // _SUBLANE * _SUBLANE)
    # >= 2 grid steps so both v7x TensorCores get work on the parallel axis.
    tm_split = (_round_up(-(-n_nodes // 2), _SUBLANE)
                if n_nodes > _SUBLANE else _SUBLANE)
    tm = max(_SUBLANE, min(_round_up(tile_m, _SUBLANE), tm_vmem, tm_split,
                           _round_up(n_nodes, _SUBLANE)))
    m_pad = _round_up(n_nodes, tm)

    # ---- Kernel input x: pad rows to a tile multiple only ------------------
    if plan[0][0] == "vpu_in":
        x_in = x.astype(jnp.float32)
        if m_pad != n_nodes:
            x_in = jnp.pad(x_in, ((0, m_pad - n_nodes), (0, 0)))
    else:
        x_in = jnp.zeros((m_pad, x_cols), jnp.float32)
        x_in = x_in.at[:n_nodes, :n_input].set(x.astype(jnp.float32))

    in_specs = [pl.BlockSpec((tm, x_cols), lambda i: (i, 0))] + wb_specs
    out_spec = pl.BlockSpec((tm, n_output), lambda i: (i, 0))

    vmem_limit = int(min(vmem_budget,
                         max(2 * weight_bytes + tm * per_row + (8 << 20),
                             32 << 20)))

    flops = 0
    for l, (kind, _) in enumerate(plan):
        if kind == "vpu_in":
            k_eff, n_eff = dims[0], _round_up(dims[1], _LANE)
        elif kind == "vpu_out1":
            k_eff, n_eff = _round_up(dims[l], _LANE), 1
        else:
            k_eff, n_eff = _round_up(dims[l], _LANE), _round_up(dims[l + 1], _LANE)
        flops += 2 * m_pad * k_eff * n_eff
    bytes_accessed = int(x_in.size) * 4 + weight_bytes + m_pad * n_output * 4
    cost = pl.CostEstimate(flops=int(flops), transcendentals=0,
                           bytes_accessed=int(bytes_accessed))

    kernel = functools.partial(_mlp_kernel, plan=plan,
                               compute_dtype=compute_dtype)

    out = pl.pallas_call(
        kernel,
        out_shape=jax.ShapeDtypeStruct((m_pad, n_output), jnp.float32),
        grid_spec=pltpu.PrefetchScalarGridSpec(
            num_scalar_prefetch=0,
            grid=(m_pad // tm,),
            in_specs=in_specs,
            out_specs=out_spec,
        ),
        compiler_params=pltpu.CompilerParams(
            dimension_semantics=("parallel",),   # node tiles shard across TCs
            vmem_limit_bytes=vmem_limit,
        ),
        cost_estimate=cost,
    )(x_in, *flat_wb)

    return out[:n_nodes]


def init_fully_connected(key, input_dim=2, hidden_layers=(150, 80), output_dim=1):
    """Mirrors torch.nn.Linear default init: U(-1/sqrt(fan_in), 1/sqrt(fan_in)).

    Weights stored as [in_features, out_features] so the kernel computes
    y = x @ W + b directly.
    """
    dims = (input_dim, *hidden_layers, output_dim)
    keys = jax.random.split(key, len(dims) - 1)
    layers = []
    for l in range(len(dims) - 1):
        fan_in, fan_out = dims[l], dims[l + 1]
        kw, kb = jax.random.split(keys[l])
        bound = 1.0 / math.sqrt(fan_in)
        w = jax.random.uniform(kw, (fan_in, fan_out), jnp.float32, -bound, bound)
        b = jax.random.uniform(kb, (fan_out,), jnp.float32, -bound, bound)
        layers.append((w, b))
    return layers


def fcn_reference_np(x, layers):
    """float64 numpy reference of Sequential(Linear, ReLU, ..., Linear)."""
    h = np.asarray(x, np.float64)
    for l, (w, b) in enumerate(layers):
        h = h @ np.asarray(w, np.float64) + np.asarray(b, np.float64)
        if l < len(layers) - 1:
            h = np.maximum(h, 0.0)
    return h.astype(np.float32)


if __name__ == "__main__":
    key = jax.random.PRNGKey(0)
    k_x, k_p, k_x2, k_p2 = jax.random.split(key, 4)

    # Module defaults: FullyConnected(input_dim=2, hidden_layers=(150, 80), output_dim=1)
    n_nodes, input_dim, hidden_layers, output_dim = 100, 2, (150, 80), 1
    x = jax.random.normal(k_x, (n_nodes, input_dim), jnp.float32)
    layers = init_fully_connected(k_p, input_dim, hidden_layers, output_dim)
    ref = fcn_reference_np(x, layers)

    # f32-operand path (tolerance covers XLA/Mosaic reduced-precision f32 matmul passes).
    out_f32 = jax.block_until_ready(fcn_forward(x, layers, compute_dtype=jnp.float32))
    assert out_f32.shape == (n_nodes, output_dim)
    assert np.allclose(np.asarray(out_f32), ref, atol=2e-2, rtol=2e-2), \
        "f32 mismatch vs reference"

    # Default path: bf16 MXU operands, f32 accumulation / bias / ReLU.
    out_bf16 = jax.block_until_ready(fcn_forward(x, layers))
    assert np.allclose(np.asarray(out_bf16), ref, atol=1e-1, rtol=1e-1), \
        "bf16 mismatch vs reference"

    # Second config exercising the generic MXU first-layer (padded-in-kernel x)
    # and the narrow multi-column output store.
    n2, in2, hid2, out2 = 64, 32, (64,), 16
    x2 = jax.random.normal(k_x2, (n2, in2), jnp.float32)
    layers2 = init_fully_connected(k_p2, in2, hid2, out2)
    ref2 = fcn_reference_np(x2, layers2)
    o2 = jax.block_until_ready(fcn_forward(x2, layers2))
    assert o2.shape == (n2, out2)
    assert np.allclose(np.asarray(o2), ref2, atol=1e-1, rtol=1e-1), \
        "config-2 mismatch vs reference"

    print("KERNEL_OK")
</pallas_src>

<mosaic_0001>
module attributes {stable_mosaic.version = 11 : i64} {
  func.func @_mlp_kernel(%arg0: i32, %arg1: memref<56x2xf32, #tpu.memory_space<vmem>>, %arg2: memref<2x256xf32, #tpu.memory_space<vmem>>, %arg3: memref<1x256xf32, #tpu.memory_space<vmem>>, %arg4: memref<256x128xf32, #tpu.memory_space<vmem>>, %arg5: memref<1x128xf32, #tpu.memory_space<vmem>>, %arg6: memref<1x128xf32, #tpu.memory_space<vmem>>, %arg7: memref<1x1xf32, #tpu.memory_space<vmem>>, %arg8: memref<56x1xf32, #tpu.memory_space<vmem>>) attributes {dimension_semantics = [#tpu.dimension_semantics<parallel>], iteration_bounds = array<i64: 2>, scalar_prefetch = 0 : i64, scratch_operands = 0 : i64, tpu.core_type = #tpu.core_type<tc>, window_params = [{transform_indices = @transform_0, window_bounds = array<i64: 56, 2>}, {pipeline_mode = #tpu.pipeline_mode<synchronous>, transform_indices = @transform_1, window_bounds = array<i64: 2, 256>}, {pipeline_mode = #tpu.pipeline_mode<synchronous>, transform_indices = @transform_2, window_bounds = array<i64: 1, 256>}, {pipeline_mode = #tpu.pipeline_mode<synchronous>, transform_indices = @transform_3, window_bounds = array<i64: 256, 128>}, {pipeline_mode = #tpu.pipeline_mode<synchronous>, transform_indices = @transform_4, window_bounds = array<i64: 1, 128>}, {pipeline_mode = #tpu.pipeline_mode<synchronous>, transform_indices = @transform_5, window_bounds = array<i64: 1, 128>}, {pipeline_mode = #tpu.pipeline_mode<synchronous>, transform_indices = @transform_6, window_bounds = array<i64: 1, 1>}, {transform_indices = @transform_7, window_bounds = array<i64: 56, 1>}]} {
    %c0 = arith.constant 0 : index
    %c0_0 = arith.constant 0 : index
    %0 = vector.load %arg1[%c0, %c0_0] : memref<56x2xf32, #tpu.memory_space<vmem>>, vector<56x2xf32>
    %c0_1 = arith.constant 0 : index
    %c0_2 = arith.constant 0 : index
    %1 = vector.load %arg2[%c0_1, %c0_2] : memref<2x256xf32, #tpu.memory_space<vmem>>, vector<2x256xf32>
    %2 = vector.extract_strided_slice %0 {offsets = [0, 0], sizes = [56, 1], strides = [1, 1]} : vector<56x2xf32> to vector<56x1xf32>
    %3 = vector.extract_strided_slice %1 {offsets = [0, 0], sizes = [1, 256], strides = [1, 1]} : vector<2x256xf32> to vector<1x256xf32>
    %4 = vector.broadcast %2 : vector<56x1xf32> to vector<56x256xf32>
    %5 = vector.broadcast %3 : vector<1x256xf32> to vector<56x256xf32>
    %6 = arith.mulf %4, %5 : vector<56x256xf32>
    %7 = vector.extract_strided_slice %0 {offsets = [0, 1], sizes = [56, 1], strides = [1, 1]} : vector<56x2xf32> to vector<56x1xf32>
    %8 = vector.extract_strided_slice %1 {offsets = [1, 0], sizes = [1, 256], strides = [1, 1]} : vector<2x256xf32> to vector<1x256xf32>
    %9 = vector.broadcast %7 : vector<56x1xf32> to vector<56x256xf32>
    %10 = vector.broadcast %8 : vector<1x256xf32> to vector<56x256xf32>
    %11 = arith.mulf %9, %10 : vector<56x256xf32>
    %12 = arith.addf %6, %11 : vector<56x256xf32>
    %c0_3 = arith.constant 0 : index
    %c0_4 = arith.constant 0 : index
    %13 = vector.load %arg3[%c0_3, %c0_4] : memref<1x256xf32, #tpu.memory_space<vmem>>, vector<1x256xf32>
    %14 = vector.broadcast %13 : vector<1x256xf32> to vector<56x256xf32>
    %15 = arith.addf %12, %14 : vector<56x256xf32>
    %cst = arith.constant 0.000000e+00 : f32
    %16 = vector.broadcast %cst : f32 to vector<56x256xf32>
    %17 = arith.maximumf %15, %16 : vector<56x256xf32>
    %c0_5 = arith.constant 0 : index
    %c0_6 = arith.constant 0 : index
    %18 = vector.load %arg4[%c0_5, %c0_6] : memref<256x128xf32, #tpu.memory_space<vmem>>, vector<256x128xf32>
    %cst_7 = arith.constant dense<0.000000e+00> : vector<56x128xf32>
    %19 = tpu.matmul %17, %18, %cst_7 {dimension_numbers = #tpu.dot_dimension_numbers<[1], [0], [0], [1], [0, 0, 1, 1], [], []>} : vector<56x256xf32>, vector<256x128xf32>, vector<56x128xf32> -> vector<56x128xf32>
    %c0_8 = arith.constant 0 : index
    %c0_9 = arith.constant 0 : index
    %20 = vector.load %arg5[%c0_8, %c0_9] : memref<1x128xf32, #tpu.memory_space<vmem>>, vector<1x128xf32>
    %21 = vector.broadcast %20 : vector<1x128xf32> to vector<56x128xf32>
    %22 = arith.addf %19, %21 : vector<56x128xf32>
    %cst_10 = arith.constant 0.000000e+00 : f32
    %23 = vector.broadcast %cst_10 : f32 to vector<56x128xf32>
    %24 = arith.maximumf %22, %23 : vector<56x128xf32>
    %c0_11 = arith.constant 0 : index
    %c0_12 = arith.constant 0 : index
    %25 = vector.load %arg6[%c0_11, %c0_12] : memref<1x128xf32, #tpu.memory_space<vmem>>, vector<1x128xf32>
    %26 = vector.broadcast %25 : vector<1x128xf32> to vector<56x128xf32>
    %27 = arith.mulf %24, %26 : vector<56x128xf32>
    %cst_13 = arith.constant dense<0.000000e+00> : vector<56xf32>
    %28 = vector.multi_reduction <add>, %27, %cst_13 [1] : vector<56x128xf32> to vector<56xf32>
    %29 = vector.shape_cast %28 : vector<56xf32> to vector<56x1xf32>
    %c0_14 = arith.constant 0 : index
    %c0_15 = arith.constant 0 : index
    %30 = vector.load %arg7[%c0_14, %c0_15] : memref<1x1xf32, #tpu.memory_space<vmem>>, vector<1x1xf32>
    %31 = vector.broadcast %30 : vector<1x1xf32> to vector<56x1xf32>
    %32 = arith.addf %29, %31 : vector<56x1xf32>
    %c0_16 = arith.constant 0 : index
    %c0_17 = arith.constant 0 : index
    %33 = vector.load %arg8[%c0_16, %c0_17] : memref<56x1xf32, #tpu.memory_space<vmem>>, vector<56x1xf32>
    tpu.vector_store %arg8[%c0_16, %c0_17], %32 {strides = array<i32>} : memref<56x1xf32, #tpu.memory_space<vmem>>, vector<56x1xf32>,
    return
  }
  func.func @transform_0(%arg0: i32) -> (i32, i32) {
    %c0_i32 = arith.constant 0 : i32
    %c0_i32_0 = arith.constant 0 : i32
    return %arg0, %c0_i32 : i32, i32
  }
  func.func @transform_1(%arg0: i32) -> (i32, i32) {
    %c0_i32 = arith.constant 0 : i32
    %c0_i32_0 = arith.constant 0 : i32
    %c0_i32_1 = arith.constant 0 : i32
    return %c0_i32, %c0_i32_0 : i32, i32
  }
  func.func @transform_2(%arg0: i32) -> (i32, i32) {
    %c0_i32 = arith.constant 0 : i32
    %c0_i32_0 = arith.constant 0 : i32
    %c0_i32_1 = arith.constant 0 : i32
    return %c0_i32, %c0_i32_0 : i32, i32
  }
  func.func @transform_3(%arg0: i32) -> (i32, i32) {
    %c0_i32 = arith.constant 0 : i32
    %c0_i32_0 = arith.constant 0 : i32
    %c0_i32_1 = arith.constant 0 : i32
    return %c0_i32, %c0_i32_0 : i32, i32
  }
  func.func @transform_4(%arg0: i32) -> (i32, i32) {
    %c0_i32 = arith.constant 0 : i32
    %c0_i32_0 = arith.constant 0 : i32
    %c0_i32_1 = arith.constant 0 : i32
    return %c0_i32, %c0_i32_0 : i32, i32
  }
  func.func @transform_5(%arg0: i32) -> (i32, i32) {
    %c0_i32 = arith.constant 0 : i32
    %c0_i32_0 = arith.constant 0 : i32
    %c0_i32_1 = arith.constant 0 : i32
    return %c0_i32, %c0_i32_0 : i32, i32
  }
  func.func @transform_6(%arg0: i32) -> (i32, i32) {
    %c0_i32 = arith.constant 0 : i32
    %c0_i32_0 = arith.constant 0 : i32
    %c0_i32_1 = arith.constant 0 : i32
    return %c0_i32, %c0_i32_0 : i32, i32
  }
  func.func @transform_7(%arg0: i32) -> (i32, i32) {
    %c0_i32 = arith.constant 0 : i32
    %c0_i32_0 = arith.constant 0 : i32
    return %arg0, %c0_i32 : i32, i32
  }
}

</mosaic_0001>

<llo_original>
// kernel: tpu_custom_call.1
$region0: #{tpu_custom_call.1}
  #allocation0 [shape = 'u32[]', space=smem, size = 0x4, offset = 0x4, fixed_abs, tag = 'smem constant byte address 0x4 - core index']
  #allocation1 [shape = 'u32[144,128]{1,0:T(1,128)}', space=vmem, size = 0x12000, scoped, tag = 'internal scratch']
  #allocation2 [shape = 'f32[1,1]{1,0:T(1,128)S(1)}', space=vmem, size = 0x200, scoped, tag = 'scoped memory for tpu_custom_call.1']
  %s0 = inlined_call_operand.vmem [shape: f32[112,2], index: 0, kind: input, shape index: {}]
  %s1 = inlined_call_operand.vmem [shape: f32[2,256], index: 1, kind: input, shape index: {}]
  %s2 = inlined_call_operand.vmem [shape: f32[1,256], index: 2, kind: input, shape index: {}]
  %s3 = inlined_call_operand.hbm [shape: f32[256,128], index: 3, kind: input, shape index: {}]
  %s4 = inlined_call_operand.vmem [shape: f32[1,128], index: 4, kind: input, shape index: {}]
  %s5 = inlined_call_operand.vmem [shape: f32[1,128], index: 5, kind: input, shape index: {}]
  %s6 = inlined_call_operand.<no memory space> [shape: f32[1,1], index: 6, kind: input, shape index: {}]
  %s7 = inlined_call_operand.vmem [shape: f32[112,1], index: 7, kind: output, shape index: {}]
  %s8 = sld [smem:[#allocation0]]
  $region65: #{tpu_custom_call.1} parent=0
    _
  %s10 = ssub.s32 1, %s8
  %s11 = scalar_select 0, %s10, %s8
  %v12 = vstv %s6
  %13 = vst [vmem:[#allocation2] sm:$0x1] %v12
  $region1: #{tpu_custom_call.1} parent=0
    #allocation3 [shape = 'u8[131072]{0}', space=vmem, size = 0x20000, scoped, tag = 'input window, operand 3, single buffered']
    #allocation4 [shape = 's32[2]{0}', space=sflag, size = 0x8, scoped, tag = 'scoped memory for tpu_custom_call.1']
    %14 = vsyncpa [#allocation4], 0
    loop: start=0, step=1, limit=4
    $region2: #{tpu_custom_call.1} parent=1 // loop_pre_header
      _
    $region3: #{tpu_custom_call.1} parent=1 // loop_header
      %s16 = sphi 0, %s20
      %p17 = scmp.ge.s32.totalorder %s16, 4
      %s26 = sphi 0, %s28
      %s29 = sphi 0, %s26
      %s30 = sphi 0, %s29
      %s46 = sphi 0, %s30
      %s50 = sphi 0, %s50
      %s52 = sphi 0, %s50
      %s53 = sphi 0, %s52
      %s67 = sphi 0, %s53
      %s71 = sphi 0, %s71
      %s73 = sphi 0, %s71
      %s74 = sphi 0, %s73
      %s88 = sphi 0, %s74
      %s92 = sphi 0, %s92
      %s94 = sphi 0, %s92
      %s95 = sphi 0, %s94
      %s109 = sphi 0, %s95
      %s113 = sphi 0, %s113
      %s115 = sphi 0, %s113
      %s116 = sphi 0, %s115
      %s130 = sphi 0, %s116
      %s134 = sphi 0, %s134
      %s136 = sphi 0, %s134
      %s137 = sphi 0, %s136
      %s151 = sphi 0, %s137
      %s155 = sphi 0, %s155
      %s157 = sphi 0, %s155
      %s158 = sphi 0, %s157
      %s172 = sphi 0, %s158
      %s178 = sphi 0, %s180
      %s181 = sphi 0, %s178
      %s182 = sphi 0, %s181
      %s198 = sphi 0, %s182
    $region4: #{tpu_custom_call.1} parent=1 // loop_header_branch
      %19 = sbr.rel (%p17) target = $region8
    $region5: #{tpu_custom_call.1} parent=1 // loop_body
      %s21 = ssub.s32 %s16, 1
      %s22 = ssub.s32 %s16, 2
      %s23 = sadd.s32 %s16, 1
      %s24 = ssub.s32 %s16, %s23
      %p25 = scmp.eq.s32.totalorder %s24, 0
      %s27 = sadd.s32 %s26, 1
      %s28 = scalar_select %p25, %s26, %s27
      %p31 = pneg %p25
      %p32 = scmp.eq.s32.totalorder %s16, 1
      %p33 = por %p31, %p32
      %p34 = scmp.ne.s32.totalorder %s26, %s29
      %p35 = scmp.eq.s32.totalorder %s16, 0
      %p36 = por %p34, %p35
      %p37 = scmp.ne.s32.totalorder %s26, %s29
      %p38 = scmp.eq.s32.totalorder %s21, 1
      %p39 = por %p37, %p38
      %p40 = scmp.ne.s32.totalorder %s29, %s30
      %p41 = scmp.eq.s32.totalorder %s21, 0
      %p42 = por %p40, %p41
      %p43 = scmp.ne.s32.totalorder %s29, %s30
      %p44 = scmp.eq.s32.totalorder %s22, 1
      %p45 = por %p43, %p44
      %p47 = scmp.ne.s32.totalorder %s30, %s46
      %p48 = scmp.eq.s32.totalorder %s22, 0
      %p49 = por %p47, %p48
      %s51 = sadd.s32 %s50, 1
      %p54 = scmp.eq.s32.totalorder %s16, 1
      %p55 = scmp.ne.s32.totalorder %s50, %s52
      %p56 = scmp.eq.s32.totalorder %s16, 0
      %p57 = por %p55, %p56
      %p58 = scmp.ne.s32.totalorder %s50, %s52
      %p59 = scmp.eq.s32.totalorder %s21, 1
      %p60 = por %p58, %p59
      %p61 = scmp.ne.s32.totalorder %s52, %s53
      %p62 = scmp.eq.s32.totalorder %s21, 0
      %p63 = por %p61, %p62
      %p64 = scmp.ne.s32.totalorder %s52, %s53
      %p65 = scmp.eq.s32.totalorder %s22, 1
      %p66 = por %p64, %p65
      %p68 = scmp.ne.s32.totalorder %s53, %s67
      %p69 = scmp.eq.s32.totalorder %s22, 0
      %p70 = por %p68, %p69
      %s72 = sadd.s32 %s71, 1
      %p75 = scmp.eq.s32.totalorder %s16, 1
      %p76 = scmp.ne.s32.totalorder %s71, %s73
      %p77 = scmp.eq.s32.totalorder %s16, 0
      %p78 = por %p76, %p77
      %p79 = scmp.ne.s32.totalorder %s71, %s73
      %p80 = scmp.eq.s32.totalorder %s21, 1
      %p81 = por %p79, %p80
      %p82 = scmp.ne.s32.totalorder %s73, %s74
      %p83 = scmp.eq.s32.totalorder %s21, 0
      %p84 = por %p82, %p83
      %p85 = scmp.ne.s32.totalorder %s73, %s74
      %p86 = scmp.eq.s32.totalorder %s22, 1
      %p87 = por %p85, %p86
      %p89 = scmp.ne.s32.totalorder %s74, %s88
      %p90 = scmp.eq.s32.totalorder %s22, 0
      %p91 = por %p89, %p90
      %s93 = sadd.s32 %s92, 1
      %p96 = scmp.eq.s32.totalorder %s16, 1
      %p97 = scmp.ne.s32.totalorder %s92, %s94
      %p98 = scmp.eq.s32.totalorder %s16, 0
      %p99 = por %p97, %p98
      %p100 = scmp.ne.s32.totalorder %s92, %s94
      %p101 = scmp.eq.s32.totalorder %s21, 1
      %p102 = por %p100, %p101
      %p103 = scmp.ne.s32.totalorder %s94, %s95
      %p104 = scmp.eq.s32.totalorder %s21, 0
      %p105 = por %p103, %p104
      %p106 = scmp.ne.s32.totalorder %s94, %s95
      %p107 = scmp.eq.s32.totalorder %s22, 1
      %p108 = por %p106, %p107
      %p110 = scmp.ne.s32.totalorder %s95, %s109
      %p111 = scmp.eq.s32.totalorder %s22, 0
      %p112 = por %p110, %p111
      %s114 = sadd.s32 %s113, 1
      %p117 = scmp.eq.s32.totalorder %s16, 1
      %p118 = scmp.ne.s32.totalorder %s113, %s115
      %p119 = scmp.eq.s32.totalorder %s16, 0
      %p120 = por %p118, %p119
      %p121 = scmp.ne.s32.totalorder %s113, %s115
      %p122 = scmp.eq.s32.totalorder %s21, 1
      %p123 = por %p121, %p122
      %p124 = scmp.ne.s32.totalorder %s115, %s116
      %p125 = scmp.eq.s32.totalorder %s21, 0
      %p126 = por %p124, %p125
      %p127 = scmp.ne.s32.totalorder %s115, %s116
      %p128 = scmp.eq.s32.totalorder %s22, 1
      %p129 = por %p127, %p128
      %p131 = scmp.ne.s32.totalorder %s116, %s130
      %p132 = scmp.eq.s32.totalorder %s22, 0
      %p133 = por %p131, %p132
      %s135 = sadd.s32 %s134, 1
      %p138 = scmp.eq.s32.totalorder %s16, 1
      %p139 = scmp.ne.s32.totalorder %s134, %s136
      %p140 = scmp.eq.s32.totalorder %s16, 0
      %p141 = por %p139, %p140
      %p142 = scmp.ne.s32.totalorder %s134, %s136
      %p143 = scmp.eq.s32.totalorder %s21, 1
      %p144 = por %p142, %p143
      %p145 = scmp.ne.s32.totalorder %s136, %s137
      %p146 = scmp.eq.s32.totalorder %s21, 0
      %p147 = por %p145, %p146
      %p148 = scmp.ne.s32.totalorder %s136, %s137
      %p149 = scmp.eq.s32.totalorder %s22, 1
      %p150 = por %p148, %p149
      %p152 = scmp.ne.s32.totalorder %s137, %s151
      %p153 = scmp.eq.s32.totalorder %s22, 0
      %p154 = por %p152, %p153
      %s156 = sadd.s32 %s155, 1
      %p159 = scmp.eq.s32.totalorder %s16, 1
      %p160 = scmp.ne.s32.totalorder %s155, %s157
      %p161 = scmp.eq.s32.totalorder %s16, 0
      %p162 = por %p160, %p161
      %p163 = scmp.ne.s32.totalorder %s155, %s157
      %p164 = scmp.eq.s32.totalorder %s21, 1
      %p165 = por %p163, %p164
      %p166 = scmp.ne.s32.totalorder %s157, %s158
      %p167 = scmp.eq.s32.totalorder %s21, 0
      %p168 = por %p166, %p167
      %p169 = scmp.ne.s32.totalorder %s157, %s158
      %p170 = scmp.eq.s32.totalorder %s22, 1
      %p171 = por %p169, %p170
      %p173 = scmp.ne.s32.totalorder %s158, %s172
      %p174 = scmp.eq.s32.totalorder %s22, 0
      %p175 = por %p173, %p174
      %s176 = ssub.s32 %s16, %s23
      %p177 = scmp.eq.s32.totalorder %s176, 0
      %s179 = sadd.s32 %s178, 1
      %s180 = scalar_select %p177, %s178, %s179
      %p183 = pneg %p177
      %p184 = scmp.eq.s32.totalorder %s16, 1
      %p185 = por %p183, %p184
      %p186 = scmp.ne.s32.totalorder %s178, %s181
      %p187 = scmp.eq.s32.totalorder %s16, 0
      %p188 = por %p186, %p187
      %p189 = scmp.ne.s32.totalorder %s178, %s181
      %p190 = scmp.eq.s32.totalorder %s21, 1
      %p191 = por %p189, %p190
      %p192 = scmp.ne.s32.totalorder %s181, %s182
      %p193 = scmp.eq.s32.totalorder %s21, 0
      %p194 = por %p192, %p193
      %p195 = scmp.ne.s32.totalorder %s181, %s182
      %p196 = scmp.eq.s32.totalorder %s22, 1
      %p197 = por %p195, %p196
      %p199 = scmp.ne.s32.totalorder %s182, %s198
      %p200 = scmp.eq.s32.totalorder %s22, 0
      %p201 = por %p199, %p200
      %p202 = scmp.le.s32.totalorder 1, %s16
      %p203 = scmp.lt.s32.totalorder %s16, 3
      %p204 = pnand %p202, %p203
      %p205 = pneg %p204
      // Predicated region
      $region9: #{tpu_custom_call.1} parent=5 // pred_check
        _
      $region10: #{tpu_custom_call.1} parent=5 // pred_check_branch
        %207 = sbr.rel (%p204) target = $region12
      $region11: #{tpu_custom_call.1} parent=5 // pred_region
        %s208 = ssub.s32 %s16, 1
        // Predicated region
        $region13: #{tpu_custom_call.1} parent=11 // pred_check
          %p209 = pneg %p63
        $region14: #{tpu_custom_call.1} parent=11 // pred_check_branch
          %211 = sbr.rel (%p209) target = $region16
        $region15: #{tpu_custom_call.1} parent=11 // pred_region
          _
        $region16: #{tpu_custom_call.1} parent=11 // pred_fallthru
          _
        // Predicated region
        $region17: #{tpu_custom_call.1} parent=11 // pred_check
          %p212 = pneg %p84
        $region18: #{tpu_custom_call.1} parent=11 // pred_check_branch
          %214 = sbr.rel (%p212) target = $region20
        $region19: #{tpu_custom_call.1} parent=11 // pred_region
          _
        $region20: #{tpu_custom_call.1} parent=11 // pred_fallthru
          _
        // Predicated region
        $region21: #{tpu_custom_call.1} parent=11 // pred_check
          %p215 = pneg %p105
        $region22: #{tpu_custom_call.1} parent=11 // pred_check_branch
          %217 = sbr.rel (%p215) target = $region24
        $region23: #{tpu_custom_call.1} parent=11 // pred_region
          %s219 = ssub.s32 4096, 4096
          %220 = vsyncadd [#allocation4], %s219
          %s221 = sshll.u32 [#allocation3], 4
          %s222 = int_to_ptr.vmem [resolvable:$true] %s221
          %227 = dma.hbm_to_vmem [thread:$0]  %s3, 4096, %s222, [#allocation4], 128, 128, 8
        $region24: #{tpu_custom_call.1} parent=11 // pred_fallthru
          _
        // Predicated region
        $region25: #{tpu_custom_call.1} parent=11 // pred_check
          %p228 = pneg %p126
        $region26: #{tpu_custom_call.1} parent=11 // pred_check_branch
          %230 = sbr.rel (%p228) target = $region28
        $region27: #{tpu_custom_call.1} parent=11 // pred_region
          _
        $region28: #{tpu_custom_call.1} parent=11 // pred_fallthru
          _
        // Predicated region
        $region29: #{tpu_custom_call.1} parent=11 // pred_check
          %p231 = pneg %p147
        $region30: #{tpu_custom_call.1} parent=11 // pred_check_branch
          %233 = sbr.rel (%p231) target = $region32
        $region31: #{tpu_custom_call.1} parent=11 // pred_region
          _
        $region32: #{tpu_custom_call.1} parent=11 // pred_fallthru
          _
        // Predicated region
        $region33: #{tpu_custom_call.1} parent=11 // pred_check
          %p234 = pneg %p168
        $region34: #{tpu_custom_call.1} parent=11 // pred_check_branch
          %236 = sbr.rel (%p234) target = $region36
        $region35: #{tpu_custom_call.1} parent=11 // pred_region
          _
        $region36: #{tpu_custom_call.1} parent=11 // pred_fallthru
          _
      $region12: #{tpu_custom_call.1} parent=5 // pred_fallthru
        _
      %p237 = scmp.lt.s32.totalorder %s16, 2
      // Predicated region
      $region37: #{tpu_custom_call.1} parent=5 // pred_check
        %p238 = pneg %p237
      $region38: #{tpu_custom_call.1} parent=5 // pred_check_branch
        %240 = sbr.rel (%p238) target = $region40
      $region39: #{tpu_custom_call.1} parent=5 // pred_region
        // Predicated region
        $region41: #{tpu_custom_call.1} parent=39 // pred_check
          %p241 = pneg %p36
        $region42: #{tpu_custom_call.1} parent=39 // pred_check_branch
          %243 = sbr.rel (%p241) target = $region44
        $region43: #{tpu_custom_call.1} parent=39 // pred_region
          %s244 = smul.u32 7, %s16
          %p245 = scmp.lt.s32.totalorder %s244, 13
          %s246 = scalar_select %p245, %s244, 13
          %s247 = smul.addr %s246, 8
          %s248 = scalar_lea.vmem %s0, %s247
          %s249 = smul.u32 7, %s16
        $region44: #{tpu_custom_call.1} parent=39 // pred_fallthru
          _
      $region40: #{tpu_custom_call.1} parent=5 // pred_fallthru
        _
      %p250 = scmp.le.s32.totalorder 1, %s16
      %p251 = scmp.lt.s32.totalorder %s16, 3
      %p252 = pnand %p250, %p251
      %p253 = pneg %p252
      // Predicated region
      $region45: #{tpu_custom_call.1} parent=5 // pred_check
        _
      $region46: #{tpu_custom_call.1} parent=5 // pred_check_branch
        %255 = sbr.rel (%p252) target = $region48
      $region47: #{tpu_custom_call.1} parent=5 // pred_region
        %s256 = ssub.s32 %s16, 1
        // Predicated region
        $region49: #{tpu_custom_call.1} parent=47 // pred_check
          %p257 = pneg %p105
        $region50: #{tpu_custom_call.1} parent=47 // pred_check_branch
          %259 = sbr.rel (%p257) target = $region52
        $region51: #{tpu_custom_call.1} parent=47 // pred_region
          %260 = dma.done [#allocation4], 4096
        $region52: #{tpu_custom_call.1} parent=47 // pred_fallthru
          _
        %s261 = smul.u32 7, %s21
        %p262 = scmp.lt.s32.totalorder %s261, 13
        %s263 = scalar_select %p262, %s261, 13
        %s264 = smul.addr %s263, 8
        %s265 = scalar_lea.vmem %s0, %s264
        %p266 = pneg %p42
        %p267 = pneg %p39
        %p268 = pneg %p63
        %p269 = pneg %p60
        %p270 = pneg %p84
        %p271 = pneg %p81
        %p272 = pneg %p105
        %p273 = pneg %p102
        %p274 = pneg %p126
        %p275 = pneg %p123
        %p276 = pneg %p147
        %p277 = pneg %p144
        %p278 = pneg %p168
        %p279 = pneg %p165
        %p280 = pneg %p194
        %p281 = pneg %p191
        %s282 = smul.u32 7, %s21
        %p283 = scmp.lt.s32.totalorder %s282, 13
        %s284 = scalar_select %p283, %s282, 13
        %s285 = smul.addr %s284, 8
        %s286 = scalar_lea.vmem %s7, %s285
        %s287 = smul.u32 7, %s21
        %p288 = scmp.lt.s32.totalorder %s287, 13
        %s289 = scalar_select %p288, %s287, 13
        %s290 = smul.addr %s289, 8
        %s291 = scalar_lea.vmem %s0, %s290
        %s292 = smul.u32 7, %s21
        %s293 = smul.u32 7, %s21
        %p294 = scmp.lt.s32.totalorder %s293, 13
        %s295 = scalar_select %p294, %s293, 13
        %s296 = smul.addr %s295, 8
        %s297 = scalar_lea.vmem %s7, %s296
        %s298 = smul.u32 7, %s21
        %v299 = vld [vmem:[%s291] sm:$0xff]
        %v300 = vld [vmem:[%s291 + $0x8] sm:$0xff]
        %v301 = vld [vmem:[%s291 + $0x10] sm:$0xff]
        %v302 = vld [vmem:[%s291 + $0x18] sm:$0xff]
        %v303 = vld [vmem:[%s291 + $0x20] sm:$0xff]
        %v304 = vld [vmem:[%s291 + $0x28] sm:$0xff]
        %v305 = vld [vmem:[%s291 + $0x30] sm:$0xff]
        %v306 = vld [vmem:[%s1] sm:$0xf]
        %308 = vset.pattern.permute.xlu0 0
        %309 = vperm.xlu0 %308, %v299
        %v310 = vpop.permute.xlu0 %309
        %313 = vset.pattern.permute.xlu0 0
        %314 = vperm.xlu0 %313, %v300
        %v315 = vpop.permute.xlu0 %314
        %318 = vset.pattern.permute.xlu0 0
        %319 = vperm.xlu0 %318, %v301
        %v320 = vpop.permute.xlu0 %319
        %323 = vset.pattern.permute.xlu0 0
        %324 = vperm.xlu0 %323, %v302
        %v325 = vpop.permute.xlu0 %324
        %328 = vset.pattern.permute.xlu0 0
        %329 = vperm.xlu0 %328, %v303
        %v330 = vpop.permute.xlu0 %329
        %333 = vset.pattern.permute.xlu0 0
        %334 = vperm.xlu0 %333, %v304
        %v335 = vpop.permute.xlu0 %334
        %338 = vset.pattern.permute.xlu0 0
        %339 = vperm.xlu0 %338, %v305
        %v340 = vpop.permute.xlu0 %339
        %v343 = vlaneseq
        %v344 = vshrl.u32 %v343, 7
        %v345 = vsub.s32 0, %v344
        %v346 = vrot.slane %v306, %v345
        %v347 = vlaneseq
        %v348 = vshrl.u32 %v347, 7
        %v349 = vsub.s32 2, %v348
        %v350 = vrot.slane %v306, %v349
        %v353 = vlaneseq
        %v354 = vshrl.u32 %v353, 7
        %v355 = vsub.s32 0, %v354
        %v356 = vrot.slane %v346, %v355
        %v357 = vlaneseq
        %v358 = vshrl.u32 %v357, 7
        %v359 = vsub.s32 0, %v358
        %v360 = vrot.slane %v350, %v359
        %v361 = vmul.f32 %v310, %v356
        %v362 = vmul.f32 %v310, %v360
        %v363 = vmul.f32 %v315, %v356
        %v364 = vmul.f32 %v315, %v360
        %v365 = vmul.f32 %v320, %v356
        %v366 = vmul.f32 %v320, %v360
        %v367 = vmul.f32 %v325, %v356
        %v368 = vmul.f32 %v325, %v360
        %v369 = vmul.f32 %v330, %v356
        %v370 = vmul.f32 %v330, %v360
        %v371 = vmul.f32 %v335, %v356
        %v372 = vmul.f32 %v335, %v360
        %v373 = vmul.f32 %v340, %v356
        %v374 = vmul.f32 %v340, %v360
        %375 = vset.pattern.permute.xlu0 1
        %376 = vperm.xlu0 %375, %v299
        %v377 = vpop.permute.xlu0 %376
        %379 = vset.pattern.permute.xlu0 1
        %380 = vperm.xlu0 %379, %v300
        %v381 = vpop.permute.xlu0 %380
        %383 = vset.pattern.permute.xlu0 1
        %384 = vperm.xlu0 %383, %v301
        %v385 = vpop.permute.xlu0 %384
        %387 = vset.pattern.permute.xlu0 1
        %388 = vperm.xlu0 %387, %v302
        %v389 = vpop.permute.xlu0 %388
        %391 = vset.pattern.permute.xlu0 1
        %392 = vperm.xlu0 %391, %v303
        %v393 = vpop.permute.xlu0 %392
        %395 = vset.pattern.permute.xlu0 1
        %396 = vperm.xlu0 %395, %v304
        %v397 = vpop.permute.xlu0 %396
        %399 = vset.pattern.permute.xlu0 1
        %400 = vperm.xlu0 %399, %v305
        %v401 = vpop.permute.xlu0 %400
        %v403 = vlaneseq
        %v404 = vshrl.u32 %v403, 7
        %v405 = vsub.s32 1, %v404
        %v406 = vrot.slane %v306, %v405
        %v407 = vlaneseq
        %v408 = vshrl.u32 %v407, 7
        %v409 = vsub.s32 3, %v408
        %v410 = vrot.slane %v306, %v409
        %v413 = vlaneseq
        %v414 = vshrl.u32 %v413, 7
        %v415 = vsub.s32 1, %v414
        %v416 = vrot.slane %v406, %v415
        %v417 = vlaneseq
        %v418 = vshrl.u32 %v417, 7
        %v419 = vsub.s32 1, %v418
        %v420 = vrot.slane %v410, %v419
        %v421 = vmul.f32 %v377, %v416
        %v422 = vmul.f32 %v377, %v420
        %v423 = vmul.f32 %v381, %v416
        %v424 = vmul.f32 %v381, %v420
        %v425 = vmul.f32 %v385, %v416
        %v426 = vmul.f32 %v385, %v420
        %v427 = vmul.f32 %v389, %v416
        %v428 = vmul.f32 %v389, %v420
        %v429 = vmul.f32 %v393, %v416
        %v430 = vmul.f32 %v393, %v420
        %v431 = vmul.f32 %v397, %v416
        %v432 = vmul.f32 %v397, %v420
        %v433 = vmul.f32 %v401, %v416
        %v434 = vmul.f32 %v401, %v420
        %v435 = vadd.f32 %v361, %v421
        %v436 = vadd.f32 %v362, %v422
        %v437 = vadd.f32 %v363, %v423
        %v438 = vadd.f32 %v364, %v424
        %v439 = vadd.f32 %v365, %v425
        %v440 = vadd.f32 %v366, %v426
        %v441 = vadd.f32 %v367, %v427
        %v442 = vadd.f32 %v368, %v428
        %v443 = vadd.f32 %v369, %v429
        %v444 = vadd.f32 %v370, %v430
        %v445 = vadd.f32 %v371, %v431
        %v446 = vadd.f32 %v372, %v432
        %v447 = vadd.f32 %v373, %v433
        %v448 = vadd.f32 %v374, %v434
        %v449 = vld [vmem:[%s2] sm:$0x3]
        %v451 = vlaneseq
        %v452 = vshrl.u32 %v451, 7
        %v453 = vsub.s32 0, %v452
        %v454 = vrot.slane %v449, %v453
        %v455 = vlaneseq
        %v456 = vshrl.u32 %v455, 7
        %v457 = vsub.s32 1, %v456
        %v458 = vrot.slane %v449, %v457
        %v461 = vadd.f32 %v435, %v454
        %v462 = vadd.f32 %v436, %v458
        %v463 = vadd.f32 %v437, %v454
        %v464 = vadd.f32 %v438, %v458
        %v465 = vadd.f32 %v439, %v454
        %v466 = vadd.f32 %v440, %v458
        %v467 = vadd.f32 %v441, %v454
        %v468 = vadd.f32 %v442, %v458
        %v469 = vadd.f32 %v443, %v454
        %v470 = vadd.f32 %v444, %v458
        %v471 = vadd.f32 %v445, %v454
        %v472 = vadd.f32 %v446, %v458
        %v473 = vadd.f32 %v447, %v454
        %v474 = vadd.f32 %v448, %v458
        %v475 = vmax.f32 %v461, 0.0
        %v476 = vmax.f32 %v462, 0.0
        %v477 = vmax.f32 %v463, 0.0
        %v478 = vmax.f32 %v464, 0.0
        %v479 = vmax.f32 %v465, 0.0
        %v480 = vmax.f32 %v466, 0.0
        %v481 = vmax.f32 %v467, 0.0
        %v482 = vmax.f32 %v468, 0.0
        %v483 = vmax.f32 %v469, 0.0
        %v484 = vmax.f32 %v470, 0.0
        %v485 = vmax.f32 %v471, 0.0
        %v486 = vmax.f32 %v472, 0.0
        %v487 = vmax.f32 %v473, 0.0
        %v488 = vmax.f32 %v474, 0.0
        %v489 = vld [vmem:[#allocation3] sm:$0xff]
        %v490 = vld [vmem:[#allocation3 + $0x8] sm:$0xff]
        %v491 = vld [vmem:[#allocation3 + $0x10] sm:$0xff]
        %v492 = vld [vmem:[#allocation3 + $0x18] sm:$0xff]
        %v493 = vld [vmem:[#allocation3 + $0x20] sm:$0xff]
        %v494 = vld [vmem:[#allocation3 + $0x28] sm:$0xff]
        %v495 = vld [vmem:[#allocation3 + $0x30] sm:$0xff]
        %v496 = vld [vmem:[#allocation3 + $0x38] sm:$0xff]
        %v497 = vld [vmem:[#allocation3 + $0x40] sm:$0xff]
        %v498 = vld [vmem:[#allocation3 + $0x48] sm:$0xff]
        %v499 = vld [vmem:[#allocation3 + $0x50] sm:$0xff]
        %v500 = vld [vmem:[#allocation3 + $0x58] sm:$0xff]
        %v501 = vld [vmem:[#allocation3 + $0x60] sm:$0xff]
        %v502 = vld [vmem:[#allocation3 + $0x68] sm:$0xff]
        %v503 = vld [vmem:[#allocation3 + $0x70] sm:$0xff]
        %v504 = vld [vmem:[#allocation3 + $0x78] sm:$0xff]
        %v505 = vld [vmem:[#allocation3 + $0x80] sm:$0xff]
        %v506 = vld [vmem:[#allocation3 + $0x88] sm:$0xff]
        %v507 = vld [vmem:[#allocation3 + $0x90] sm:$0xff]
        %v508 = vld [vmem:[#allocation3 + $0x98] sm:$0xff]
        %v509 = vld [vmem:[#allocation3 + $0xa0] sm:$0xff]
        %v510 = vld [vmem:[#allocation3 + $0xa8] sm:$0xff]
        %v511 = vld [vmem:[#allocation3 + $0xb0] sm:$0xff]
        %v512 = vld [vmem:[#allocation3 + $0xb8] sm:$0xff]
        %v513 = vld [vmem:[#allocation3 + $0xc0] sm:$0xff]
        %v514 = vld [vmem:[#allocation3 + $0xc8] sm:$0xff]
        %v515 = vld [vmem:[#allocation3 + $0xd0] sm:$0xff]
        %v516 = vld [vmem:[#allocation3 + $0xd8] sm:$0xff]
        %v517 = vld [vmem:[#allocation3 + $0xe0] sm:$0xff]
        %v518 = vld [vmem:[#allocation3 + $0xe8] sm:$0xff]
        %v519 = vld [vmem:[#allocation3 + $0xf0] sm:$0xff]
        %v520 = vld [vmem:[#allocation3 + $0xf8] sm:$0xff]
        %v521 = vld [vmem:[%s4] sm:$0x1]
        %v523 = vlaneseq
        %v524 = vshrl.u32 %v523, 7
        %v525 = vsub.s32 0, %v524
        %v526 = vrot.slane %v521, %v525
        %528 = vmatprep.subr.mxu0 0.0
        %529 = vmatpush1.msra.mxu0 %v489
        %530 = vmatprep.subr.mxu0 0.0
        %531 = vmatpush1.msra.mxu0 %v490
        %532 = vmatprep.subr.mxu0 0.0
        %533 = vmatpush1.msra.mxu0 %v491
        %534 = vmatprep.subr.mxu0 0.0
        %535 = vmatpush1.msra.mxu0 %v492
        %536 = vmatprep.subr.mxu0 0.0
        %537 = vmatpush1.msra.mxu0 %v493
        %538 = vmatprep.subr.mxu0 0.0
        %539 = vmatpush1.msra.mxu0 %v494
        %540 = vmatprep.subr.mxu0 0.0
        %541 = vmatpush1.msra.mxu0 %v495
        %542 = vmatprep.subr.mxu0 0.0
        %543 = vmatpush1.msra.mxu0 %v496
        %544 = vmatprep.subr.mxu0 0.0
        %545 = vmatpush1.msra.mxu0 %v497
        %546 = vmatprep.subr.mxu0 0.0
        %547 = vmatpush1.msra.mxu0 %v498
        %548 = vmatprep.subr.mxu0 0.0
        %549 = vmatpush1.msra.mxu0 %v499
        %550 = vmatprep.subr.mxu0 0.0
        %551 = vmatpush1.msra.mxu0 %v500
        %552 = vmatprep.subr.mxu0 0.0
        %553 = vmatpush1.msra.mxu0 %v501
        %554 = vmatprep.subr.mxu0 0.0
        %555 = vmatpush1.msra.mxu0 %v502
        %556 = vmatprep.subr.mxu0 0.0
        %557 = vmatpush1.msra.mxu0 %v503
        %558 = vmatprep.subr.mxu0 0.0
        %559 = vmatpush1.msra.mxu0 %v504
        %560 = vmatprep.subr.mxu0 0.0
        %561 = vmatpush1.msra.mxu0 %v505
        %562 = vmatprep.subr.mxu0 0.0
        %563 = vmatpush1.msra.mxu0 %v506
        %564 = vmatprep.subr.mxu0 0.0
        %565 = vmatpush1.msra.mxu0 %v507
        %566 = vmatprep.subr.mxu0 0.0
        %567 = vmatpush1.msra.mxu0 %v508
        %568 = vmatprep.subr.mxu0 0.0
        %569 = vmatpush1.msra.mxu0 %v509
        %570 = vmatprep.subr.mxu0 0.0
        %571 = vmatpush1.msra.mxu0 %v510
        %572 = vmatprep.subr.mxu0 0.0
        %573 = vmatpush1.msra.mxu0 %v511
        %574 = vmatprep.subr.mxu0 0.0
        %575 = vmatpush1.msra.mxu0 %v512
        %576 = vmatprep.subr.mxu0 0.0
        %577 = vmatpush1.msra.mxu0 %v513
        %578 = vmatprep.subr.mxu0 0.0
        %579 = vmatpush1.msra.mxu0 %v514
        %580 = vmatprep.subr.mxu0 0.0
        %581 = vmatpush1.msra.mxu0 %v515
        %582 = vmatprep.subr.mxu0 0.0
        %583 = vmatpush1.msra.mxu0 %v516
        %584 = vmatprep.subr.mxu0 0.0
        %585 = vmatpush1.msra.mxu0 %v517
        %586 = vmatprep.subr.mxu0 0.0
        %587 = vmatpush1.msra.mxu0 %v518
        %588 = vmatprep.subr.mxu0 0.0
        %589 = vmatpush1.msra.mxu0 %v519
        %590 = vmatprep.subr.mxu0 0.0
        %591 = vmatpush1.msra.mxu0 %v520
        %592 = vmatprep.mubr.f32.mxu0 %v476
        %593 = vmatmul.mubr.f32.gmra.mrb[0].mxu0 %v475
        %v594 = vpop.f32.mrb[0].mxu0
        %v595 = vadd.f32 %v526, %v594
        %v596 = vpop.f32.mrb[0].mxu0
        %597 = vmatprep.mubr.f32.mxu0 %v478
        %598 = vmatmul.mubr.f32.gmra.mrb[0].mxu0 %v477
        %v599 = vpop.f32.mrb[0].mxu0
        %v600 = vadd.f32 %v526, %v599
        %v601 = vpop.f32.mrb[0].mxu0
        %602 = vmatprep.mubr.f32.mxu0 %v480
        %603 = vmatmul.mubr.f32.gmra.mrb[0].mxu0 %v479
        %v604 = vpop.f32.mrb[0].mxu0
        %v605 = vadd.f32 %v526, %v604
        %v606 = vpop.f32.mrb[0].mxu0
        %607 = vmatprep.mubr.f32.mxu0 %v482
        %608 = vmatmul.mubr.f32.gmra.mrb[0].mxu0 %v481
        %v609 = vpop.f32.mrb[0].mxu0
        %v610 = vadd.f32 %v526, %v609
        %v611 = vpop.f32.mrb[0].mxu0
        %612 = vmatprep.mubr.f32.mxu0 %v484
        %613 = vmatmul.mubr.f32.gmra.mrb[0].mxu0 %v483
        %v614 = vpop.f32.mrb[0].mxu0
        %v615 = vadd.f32 %v526, %v614
        %v616 = vpop.f32.mrb[0].mxu0
        %617 = vmatprep.mubr.f32.mxu0 %v486
        %618 = vmatmul.mubr.f32.gmra.mrb[0].mxu0 %v485
        %v619 = vpop.f32.mrb[0].mxu0
        %v620 = vadd.f32 %v526, %v619
        %v621 = vpop.f32.mrb[0].mxu0
        %622 = vmatprep.mubr.f32.mxu0 %v488
        %623 = vmatmul.mubr.f32.gmra.mrb[0].mxu0 %v487
        %v624 = vpop.f32.mrb[0].mxu0
        %v625 = vadd.f32 %v526, %v624
        %v626 = vpop.f32.mrb[0].mxu0
        %627 = vdwg.mxu0
        %v628 = vmax.f32 %v595, 0.0
        %v629 = vmax.f32 %v600, 0.0
        %v630 = vmax.f32 %v605, 0.0
        %v631 = vmax.f32 %v610, 0.0
        %v632 = vmax.f32 %v615, 0.0
        %v633 = vmax.f32 %v620, 0.0
        %v634 = vmax.f32 %v625, 0.0
        %v635 = vld [vmem:[%s5] sm:$0x1]
        %v637 = vlaneseq
        %v638 = vshrl.u32 %v637, 7
        %v639 = vsub.s32 0, %v638
        %v640 = vrot.slane %v635, %v639
        %v642 = vmul.f32 %v628, %v640
        %v643 = vmul.f32 %v629, %v640
        %v644 = vmul.f32 %v630, %v640
        %v645 = vmul.f32 %v631, %v640
        %v646 = vmul.f32 %v632, %v640
        %v647 = vmul.f32 %v633, %v640
        %v648 = vmul.f32 %v634, %v640
        %649 = vadd.xlane.f32.xlu0 %v642
        %v650 = vpop.xlane.xlu0 %649
        %651 = vadd.xlane.f32.xlu0 %v643
        %v652 = vpop.xlane.xlu0 %651
        %653 = vadd.xlane.f32.xlu0 %v644
        %v654 = vpop.xlane.xlu0 %653
        %655 = vadd.xlane.f32.xlu0 %v645
        %v656 = vpop.xlane.xlu0 %655
        %657 = vadd.xlane.f32.xlu0 %v646
        %v658 = vpop.xlane.xlu0 %657
        %659 = vadd.xlane.f32.xlu0 %v647
        %v660 = vpop.xlane.xlu0 %659
        %661 = vadd.xlane.f32.xlu0 %v648
        %v662 = vpop.xlane.xlu0 %661
        %v663 = vld [vmem:[#allocation2] sm:$0x1]
        %v665 = vlaneseq
        %v666 = vshrl.u32 %v665, 7
        %v667 = vsub.s32 0, %v666
        %v668 = vrot.slane %v663, %v667
        %v670 = vadd.f32 %v650, %v668
        %v671 = vadd.f32 %v652, %v668
        %v672 = vadd.f32 %v654, %v668
        %v673 = vadd.f32 %v656, %v668
        %v674 = vadd.f32 %v658, %v668
        %v675 = vadd.f32 %v660, %v668
        %v676 = vadd.f32 %v662, %v668
        %vm677 = vcmask 7168
        %678 = vst.msk [vmem:[%s297] sm:$0xff] %vm677, %v670
        %679 = vst.msk [vmem:[%s297 + $0x8] sm:$0xff] %vm677, %v671
        %680 = vst.msk [vmem:[%s297 + $0x10] sm:$0xff] %vm677, %v672
        %681 = vst.msk [vmem:[%s297 + $0x18] sm:$0xff] %vm677, %v673
        %682 = vst.msk [vmem:[%s297 + $0x20] sm:$0xff] %vm677, %v674
        %683 = vst.msk [vmem:[%s297 + $0x28] sm:$0xff] %vm677, %v675
        %684 = vst.msk [vmem:[%s297 + $0x30] sm:$0xff] %vm677, %v676
        %s685 = smul.u32 7, %s21
        %p686 = scmp.lt.s32.totalorder %s685, 13
        %s687 = scalar_select %p686, %s685, 13
        %s688 = smul.addr %s687, 8
        %s689 = scalar_lea.vmem %s7, %s688
        // Predicated region
        $region53: #{tpu_custom_call.1} parent=47 // pred_check
          %p690 = pneg %p191
        $region54: #{tpu_custom_call.1} parent=47 // pred_check_branch
          %692 = sbr.rel (%p690) target = $region56
        $region55: #{tpu_custom_call.1} parent=47 // pred_region
          %s693 = smul.u32 7, %s21
        $region56: #{tpu_custom_call.1} parent=47 // pred_fallthru
          _
      $region48: #{tpu_custom_call.1} parent=5 // pred_fallthru
        _
      %p694 = scmp.le.s32.totalorder 2, %s16
      // Predicated region
      $region57: #{tpu_custom_call.1} parent=5 // pred_check
        %p695 = pneg %p694
      $region58: #{tpu_custom_call.1} parent=5 // pred_check_branch
        %697 = sbr.rel (%p695) target = $region60
      $region59: #{tpu_custom_call.1} parent=5 // pred_region
        %s698 = ssub.s32 %s16, 2
        // Predicated region
        $region61: #{tpu_custom_call.1} parent=59 // pred_check
          %p699 = pneg %p197
        $region62: #{tpu_custom_call.1} parent=59 // pred_check_branch
          %701 = sbr.rel (%p699) target = $region64
        $region63: #{tpu_custom_call.1} parent=59 // pred_region
          %s702 = smul.u32 7, %s22
          %p703 = scmp.lt.s32.totalorder %s702, 13
          %s704 = scalar_select %p703, %s702, 13
          %s705 = smul.addr %s704, 8
          %s706 = scalar_lea.vmem %s7, %s705
        $region64: #{tpu_custom_call.1} parent=59 // pred_fallthru
          _
      $region60: #{tpu_custom_call.1} parent=5 // pred_fallthru
        _
    $region6: #{tpu_custom_call.1} parent=1 // loop_footer
      %s20 = sadd.s32 1, %s16
    $region7: #{tpu_custom_call.1} parent=1 // loop_footer_branch
      %15 = sbr.rel target = $region3
    $region8: #{tpu_custom_call.1} parent=1 // loop_exit
      _
    %707 = vsyncpa [#allocation4], 1
    %s708 = scalar_lea.sflag [#allocation4], 1
    %709 = vsyncpa %s708, 1

</llo_original>
